<compile_context>
chip_gen: v7x
topology: tpu7x:2x2x1
jax: 0.10.0
libtpu: 0.0.40
codegen_flags: <defaults>
</compile_context>

<pallas_src>
import jax
import jax.numpy as jnp
from jax import lax
from jax.experimental import pallas as pl
from jax.experimental.pallas import tpu as pltpu

LANE = 128


def _cdiv(a, b):
    return (a + b - 1) // b


def _round_up(n, m):
    return ((n + m - 1) // m) * m


# ----------------------------- Pallas kernel --------------------------------
def _mlp_kernel(x_ref, w1_ref, w23_ref, w4r_ref, b_ref, o_ref):
    """Fused 4-layer MLP for one batch tile.

    x_ref   : (tm, feat)     f32   activation tile (unpadded features)
    w1_ref  : (feat, 128)    bf16  layer-1 weight (BN folded, out padded)
    w23_ref : (2, 128, 128)  bf16  layer-2/3 weights (BN folded, padded)
    w4r_ref : (8, 128)       f32   row 0 = output weight column, rows 1..7 = 0
    b_ref   : (4, 128)       f32   folded biases; b_ref[3, 0] = output bias
    o_ref   : (1, 1, tm)     f32   lane-packed per-row outputs
    """
    b = b_ref[...]
    x = x_ref[...].astype(jnp.bfloat16)        # in-kernel cast (free VPU work)

    # layer 1: Linear (+folded BN) + ReLU
    h = jnp.dot(x, w1_ref[...], preferred_element_type=jnp.float32)
    h = jnp.maximum(h + b[0:1, :], 0.0).astype(jnp.bfloat16)

    # layer 2: Linear (+folded BN) + ReLU     (dropout = identity in eval)
    h = jnp.dot(h, w23_ref[0], preferred_element_type=jnp.float32)
    h = jnp.maximum(h + b[1:2, :], 0.0).astype(jnp.bfloat16)

    # layer 3: Linear (+folded BN) + ReLU     (dropout = identity in eval)
    h = jnp.dot(h, w23_ref[1], preferred_element_type=jnp.float32)
    h = jnp.maximum(h + b[2:3, :], 0.0)        # keep f32 for the output layer

    # output layer, lane-packed: (8,128) @ (128,tm) -> (8,tm); row 0 is y.
    y = jnp.dot(w4r_ref[...], h.T, preferred_element_type=jnp.float32)
    o_ref[0] = y[0:1, :] + b[3:4, 0:1]


# ------------------------------- wrapper -------------------------------------
@jax.jit
def neural_net_forward(x, params):
    """x: (batch, input_len) f32.  params: output of fold_params."""
    batch, feat = x.shape

    # Batch tiling:
    #  * batch <= 512  : a single tile rounded to the 8-sublane boundary.
    #  * 512 < batch   : >= 2 grid steps (both v7x TensorCores busy), tiles
    #                    capped at 2048 rows (well inside scoped VMEM).
    if batch <= 512:
        tm = _round_up(batch, 8)
    elif batch < 4096:
        tm = _round_up(_cdiv(batch, 2), 8)
    else:
        tm = 2048
    n_tiles = _cdiv(batch, tm)          # ragged last tile, no batch round-up

    weight_bytes = sum(int(params[k].size) * params[k].dtype.itemsize
                       for k in ("w1", "w23", "w4rows", "b"))
    flops = 2 * n_tiles * tm * (feat * LANE + 2 * LANE * LANE + 8 * LANE)
    bytes_accessed = x.size * x.dtype.itemsize + weight_bytes + n_tiles * tm * 4

    out = pl.pallas_call(
        _mlp_kernel,
        out_shape=jax.ShapeDtypeStruct((n_tiles, 1, tm), jnp.float32),
        grid_spec=pltpu.PrefetchScalarGridSpec(
            num_scalar_prefetch=0,
            grid=(n_tiles,),
            in_specs=[
                pl.BlockSpec((tm, feat), lambda i: (i, 0)),          # x tile (f32, unpadded)
                pl.BlockSpec((feat, LANE), lambda i: (0, 0)),        # w1 (bf16, resident)
                pl.BlockSpec((2, LANE, LANE), lambda i: (0, 0, 0)),  # w2,w3 stacked (bf16)
                pl.BlockSpec((8, LANE), lambda i: (0, 0)),           # w4 as rows (f32)
                pl.BlockSpec((4, LANE), lambda i: (0, 0)),           # folded biases (f32)
            ],
            out_specs=pl.BlockSpec((1, 1, tm), lambda i: (i, 0, 0)), # lane-packed rows
        ),
        compiler_params=pltpu.CompilerParams(
            dimension_semantics=("parallel",),
            vmem_limit_bytes=32 * 1024 * 1024,   # explicit: safe on v5e/v6e/v7x
        ),
        cost_estimate=pl.CostEstimate(flops=flops, transcendentals=0,
                                      bytes_accessed=bytes_accessed),
    )(x, params["w1"], params["w23"], params["w4rows"], params["b"])

    # (n_tiles, 1, tm) -> flat rows -> (batch, 1).  Contiguous, tiny slice.
    return out.reshape(n_tiles * tm)[:batch].reshape(batch, 1)


# ------------------------------ parameter glue -------------------------------
def fold_params(raw):
    """Fold BN(eval) into Linear weights/bias, pad hidden dims to 128, pack.

    Padded weight columns and bias lanes are exactly 0, so padded lanes stay 0
    through ReLU and contribute nothing downstream.  The input (K) dimension of
    layer 1 is left unpadded so x can be fed straight from HBM.
    """
    eps = 1e-5
    feat = raw["w1"].shape[0]

    def fold(i):
        s = raw[f"gamma{i}"] / jnp.sqrt(raw[f"var{i}"] + eps)
        return raw[f"w{i}"] * s[None, :], (raw[f"b{i}"] - raw[f"mean{i}"]) * s + raw[f"beta{i}"]

    biases = jnp.zeros((4, LANE), jnp.float32)

    w1f, b1 = fold(1)
    w1p = jnp.zeros((feat, LANE), jnp.float32).at[:, : w1f.shape[1]].set(w1f)
    biases = biases.at[0, : b1.shape[0]].set(b1)

    w23p = jnp.zeros((2, LANE, LANE), jnp.float32)
    for j, i in enumerate((2, 3)):
        wf, bi = fold(i)
        w23p = w23p.at[j, : wf.shape[0], : wf.shape[1]].set(wf)
        biases = biases.at[i - 1, : bi.shape[0]].set(bi)

    w4 = raw["w4"]                                             # (h3, 1)
    w4rows = jnp.zeros((8, LANE), jnp.float32).at[0, : w4.shape[0]].set(w4[:, 0])
    biases = biases.at[3, 0].set(raw["b4"][0])

    return {
        "w1": w1p.astype(jnp.bfloat16),
        "w23": w23p.astype(jnp.bfloat16),
        "w4rows": w4rows,          # f32 — final layer runs in f32
        "b": biases,               # f32
    }


def init_raw_params(key, input_len, h1, h2, h3):
    """Deterministic synthetic parameters (shapes from NeuralNet.__init__)."""
    ks = jax.random.split(key, 16)

    def lin(kw, kb, fan_in, fan_out):
        lim = 1.0 / jnp.sqrt(fan_in)
        w = jax.random.uniform(kw, (fan_in, fan_out), jnp.float32, -lim, lim)
        b = jax.random.uniform(kb, (fan_out,), jnp.float32, -lim, lim)
        return w, b

    raw = {}
    raw["w1"], raw["b1"] = lin(ks[0], ks[1], input_len, h1)
    raw["w2"], raw["b2"] = lin(ks[2], ks[3], h1, h2)
    raw["w3"], raw["b3"] = lin(ks[4], ks[5], h2, h3)
    raw["w4"], raw["b4"] = lin(ks[6], ks[7], h3, 1)
    for i, h in zip((1, 2, 3), (h1, h2, h3)):
        kg, kb, km, kv = jax.random.split(ks[7 + i], 4)
        raw[f"gamma{i}"] = 1.0 + 0.1 * jax.random.normal(kg, (h,), jnp.float32)
        raw[f"beta{i}"] = 0.1 * jax.random.normal(kb, (h,), jnp.float32)
        raw[f"mean{i}"] = 0.1 * jax.random.normal(km, (h,), jnp.float32)
        raw[f"var{i}"] = 1.0 + 0.1 * jax.random.uniform(kv, (h,), jnp.float32)
    return raw


# ------------------------------ references -----------------------------------
def reference_forward_packed(x, p):
    """Pure-JAX reference using the SAME packed bf16/f32 params as the kernel."""
    h = x.astype(jnp.bfloat16)
    h = jnp.dot(h, p["w1"], preferred_element_type=jnp.float32)
    h = jnp.maximum(h + p["b"][0:1], 0.0).astype(jnp.bfloat16)
    h = jnp.dot(h, p["w23"][0], preferred_element_type=jnp.float32)
    h = jnp.maximum(h + p["b"][1:2], 0.0).astype(jnp.bfloat16)
    h = jnp.dot(h, p["w23"][1], preferred_element_type=jnp.float32)
    h = jnp.maximum(h + p["b"][2:3], 0.0)
    y = jnp.sum(h * p["w4rows"][0][None, :], axis=1, keepdims=True) + p["b"][3, 0]
    return y


def reference_forward_f32(x, raw):
    """Unpadded f32 reference with torch NeuralNet (eval) semantics."""
    eps = 1e-5
    h = x
    for i in (1, 2, 3):
        h = jnp.dot(h, raw[f"w{i}"], precision=lax.Precision.HIGHEST) + raw[f"b{i}"]
        s = raw[f"gamma{i}"] / jnp.sqrt(raw[f"var{i}"] + eps)
        h = (h - raw[f"mean{i}"]) * s + raw[f"beta{i}"]
        h = jnp.maximum(h, 0.0)
    return jnp.dot(h, raw["w4"], precision=lax.Precision.HIGHEST) + raw["b4"]


# ----------------------------------- main ------------------------------------
if __name__ == "__main__":
    # Small shapes consistent with the module: hidden sizes 100/50/30, out 1.
    input_len = 32
    h1_size, h2_size, h3_size = 100, 50, 30

    key = jax.random.PRNGKey(0)
    k_x, k_p, k_x2 = jax.random.split(key, 3)

    raw = init_raw_params(k_p, input_len, h1_size, h2_size, h3_size)
    params = fold_params(raw)

    # --- small single-tile case ---------------------------------------------
    batch = 8
    x = jax.random.normal(k_x, (batch, input_len), jnp.float32)
    y = jax.block_until_ready(neural_net_forward(x, params))
    assert y.shape == (batch, 1), y.shape

    y_ref = reference_forward_packed(x, params)
    err = float(jnp.max(jnp.abs(y - y_ref)))
    assert jnp.allclose(y, y_ref, atol=1e-2, rtol=1e-2), f"max abs err {err}"

    y_f32 = reference_forward_f32(x, raw)
    err_f32 = float(jnp.max(jnp.abs(y - y_f32)))
    assert err_f32 < 0.05, f"bf16-vs-f32 max abs err {err_f32}"

    # --- multi-tile case: 2 grid steps + ragged last tile ---------------------
    batch2 = 1000
    x2 = jax.random.normal(k_x2, (batch2, input_len), jnp.float32)
    y2 = jax.block_until_ready(neural_net_forward(x2, params))
    assert y2.shape == (batch2, 1), y2.shape

    y2_ref = reference_forward_packed(x2, params)
    err2 = float(jnp.max(jnp.abs(y2 - y2_ref)))
    assert jnp.allclose(y2, y2_ref, atol=1e-2, rtol=1e-2), f"max abs err {err2}"

    print("KERNEL_OK")
</pallas_src>

<mosaic_0001>
module attributes {stable_mosaic.version = 11 : i64} {
  func.func @_mlp_kernel(%arg0: i32, %arg1: memref<8x32xf32, #tpu.memory_space<vmem>>, %arg2: memref<32x128xbf16, #tpu.memory_space<vmem>>, %arg3: memref<2x128x128xbf16, #tpu.memory_space<vmem>>, %arg4: memref<8x128xf32, #tpu.memory_space<vmem>>, %arg5: memref<4x128xf32, #tpu.memory_space<vmem>>, %arg6: memref<1x1x8xf32, #tpu.memory_space<vmem>>) attributes {dimension_semantics = [#tpu.dimension_semantics<parallel>], iteration_bounds = array<i64: 1>, scalar_prefetch = 0 : i64, scratch_operands = 0 : i64, tpu.core_type = #tpu.core_type<tc>, window_params = [{transform_indices = @transform_0, window_bounds = array<i64: 8, 32>}, {pipeline_mode = #tpu.pipeline_mode<synchronous>, transform_indices = @transform_1, window_bounds = array<i64: 32, 128>}, {pipeline_mode = #tpu.pipeline_mode<synchronous>, transform_indices = @transform_2, window_bounds = array<i64: 2, 128, 128>}, {pipeline_mode = #tpu.pipeline_mode<synchronous>, transform_indices = @transform_3, window_bounds = array<i64: 8, 128>}, {pipeline_mode = #tpu.pipeline_mode<synchronous>, transform_indices = @transform_4, window_bounds = array<i64: 4, 128>}, {transform_indices = @transform_5, window_bounds = array<i64: 1, 1, 8>}]} {
    %c0 = arith.constant 0 : index
    %c0_0 = arith.constant 0 : index
    %0 = vector.load %arg5[%c0, %c0_0] : memref<4x128xf32, #tpu.memory_space<vmem>>, vector<4x128xf32>
    %c0_1 = arith.constant 0 : index
    %c0_2 = arith.constant 0 : index
    %1 = vector.load %arg1[%c0_1, %c0_2] : memref<8x32xf32, #tpu.memory_space<vmem>>, vector<8x32xf32>
    %2 = arith.truncf %1 : vector<8x32xf32> to vector<8x32xbf16>
    %c0_3 = arith.constant 0 : index
    %c0_4 = arith.constant 0 : index
    %3 = vector.load %arg2[%c0_3, %c0_4] : memref<32x128xbf16, #tpu.memory_space<vmem>>, vector<32x128xbf16>
    %cst = arith.constant dense<0.000000e+00> : vector<8x128xf32>
    %4 = tpu.matmul %2, %3, %cst {dimension_numbers = #tpu.dot_dimension_numbers<[1], [0], [0], [1], [0, 0, 1, 1], [], []>} : vector<8x32xbf16>, vector<32x128xbf16>, vector<8x128xf32> -> vector<8x128xf32>
    %5 = vector.extract_strided_slice %0 {offsets = [0, 0], sizes = [1, 128], strides = [1, 1]} : vector<4x128xf32> to vector<1x128xf32>
    %6 = vector.broadcast %5 : vector<1x128xf32> to vector<8x128xf32>
    %7 = arith.addf %4, %6 : vector<8x128xf32>
    %cst_5 = arith.constant 0.000000e+00 : f32
    %8 = vector.broadcast %cst_5 : f32 to vector<8x128xf32>
    %9 = arith.maximumf %7, %8 : vector<8x128xf32>
    %10 = arith.truncf %9 : vector<8x128xf32> to vector<8x128xbf16>
    %c0_6 = arith.constant 0 : index
    %c0_7 = arith.constant 0 : index
    %c0_8 = arith.constant 0 : index
    %11 = vector.load %arg3[%c0_6, %c0_7, %c0_8] : memref<2x128x128xbf16, #tpu.memory_space<vmem>>, vector<1x128x128xbf16>
    %12 = vector.shape_cast %11 : vector<1x128x128xbf16> to vector<128x128xbf16>
    %cst_9 = arith.constant dense<0.000000e+00> : vector<8x128xf32>
    %13 = tpu.matmul %10, %12, %cst_9 {dimension_numbers = #tpu.dot_dimension_numbers<[1], [0], [0], [1], [0, 0, 1, 1], [], []>} : vector<8x128xbf16>, vector<128x128xbf16>, vector<8x128xf32> -> vector<8x128xf32>
    %14 = vector.extract_strided_slice %0 {offsets = [1, 0], sizes = [1, 128], strides = [1, 1]} : vector<4x128xf32> to vector<1x128xf32>
    %15 = vector.broadcast %14 : vector<1x128xf32> to vector<8x128xf32>
    %16 = arith.addf %13, %15 : vector<8x128xf32>
    %cst_10 = arith.constant 0.000000e+00 : f32
    %17 = vector.broadcast %cst_10 : f32 to vector<8x128xf32>
    %18 = arith.maximumf %16, %17 : vector<8x128xf32>
    %19 = arith.truncf %18 : vector<8x128xf32> to vector<8x128xbf16>
    %c1 = arith.constant 1 : index
    %c0_11 = arith.constant 0 : index
    %c0_12 = arith.constant 0 : index
    %20 = vector.load %arg3[%c1, %c0_11, %c0_12] : memref<2x128x128xbf16, #tpu.memory_space<vmem>>, vector<1x128x128xbf16>
    %21 = vector.shape_cast %20 : vector<1x128x128xbf16> to vector<128x128xbf16>
    %cst_13 = arith.constant dense<0.000000e+00> : vector<8x128xf32>
    %22 = tpu.matmul %19, %21, %cst_13 {dimension_numbers = #tpu.dot_dimension_numbers<[1], [0], [0], [1], [0, 0, 1, 1], [], []>} : vector<8x128xbf16>, vector<128x128xbf16>, vector<8x128xf32> -> vector<8x128xf32>
    %23 = vector.extract_strided_slice %0 {offsets = [2, 0], sizes = [1, 128], strides = [1, 1]} : vector<4x128xf32> to vector<1x128xf32>
    %24 = vector.broadcast %23 : vector<1x128xf32> to vector<8x128xf32>
    %25 = arith.addf %22, %24 : vector<8x128xf32>
    %cst_14 = arith.constant 0.000000e+00 : f32
    %26 = vector.broadcast %cst_14 : f32 to vector<8x128xf32>
    %27 = arith.maximumf %25, %26 : vector<8x128xf32>
    %c0_15 = arith.constant 0 : index
    %c0_16 = arith.constant 0 : index
    %28 = vector.load %arg4[%c0_15, %c0_16] : memref<8x128xf32, #tpu.memory_space<vmem>>, vector<8x128xf32>
    %29 = tpu.transpose %27, [1, 0] : vector<8x128xf32> -> vector<128x8xf32>
    %cst_17 = arith.constant dense<0.000000e+00> : vector<8x8xf32>
    %30 = tpu.matmul %28, %29, %cst_17 {dimension_numbers = #tpu.dot_dimension_numbers<[1], [0], [0], [1], [0, 0, 1, 1], [], []>} : vector<8x128xf32>, vector<128x8xf32>, vector<8x8xf32> -> vector<8x8xf32>
    %31 = vector.extract_strided_slice %30 {offsets = [0, 0], sizes = [1, 8], strides = [1, 1]} : vector<8x8xf32> to vector<1x8xf32>
    %32 = vector.extract_strided_slice %0 {offsets = [3, 0], sizes = [1, 1], strides = [1, 1]} : vector<4x128xf32> to vector<1x1xf32>
    %33 = vector.broadcast %32 : vector<1x1xf32> to vector<1x8xf32>
    %34 = arith.addf %31, %33 : vector<1x8xf32>
    %c0_18 = arith.constant 0 : index
    %c0_19 = arith.constant 0 : index
    %c0_20 = arith.constant 0 : index
    %35 = vector.load %arg6[%c0_18, %c0_19, %c0_20] : memref<1x1x8xf32, #tpu.memory_space<vmem>>, vector<1x1x8xf32>
    %36 = vector.shape_cast %35 : vector<1x1x8xf32> to vector<1x8xf32>
    %37 = vector.shape_cast %34 : vector<1x8xf32> to vector<1x1x8xf32>
    tpu.vector_store %arg6[%c0_18, %c0_19, %c0_20], %37 {strides = array<i32>} : memref<1x1x8xf32, #tpu.memory_space<vmem>>, vector<1x1x8xf32>,
    return
  }
  func.func @transform_0(%arg0: i32) -> (i32, i32) {
    %c0_i32 = arith.constant 0 : i32
    %c0_i32_0 = arith.constant 0 : i32
    return %arg0, %c0_i32 : i32, i32
  }
  func.func @transform_1(%arg0: i32) -> (i32, i32) {
    %c0_i32 = arith.constant 0 : i32
    %c0_i32_0 = arith.constant 0 : i32
    %c0_i32_1 = arith.constant 0 : i32
    return %c0_i32, %c0_i32_0 : i32, i32
  }
  func.func @transform_2(%arg0: i32) -> (i32, i32, i32) {
    %c0_i32 = arith.constant 0 : i32
    %c0_i32_0 = arith.constant 0 : i32
    %c0_i32_1 = arith.constant 0 : i32
    %c0_i32_2 = arith.constant 0 : i32
    return %c0_i32, %c0_i32_0, %c0_i32_1 : i32, i32, i32
  }
  func.func @transform_3(%arg0: i32) -> (i32, i32) {
    %c0_i32 = arith.constant 0 : i32
    %c0_i32_0 = arith.constant 0 : i32
    %c0_i32_1 = arith.constant 0 : i32
    return %c0_i32, %c0_i32_0 : i32, i32
  }
  func.func @transform_4(%arg0: i32) -> (i32, i32) {
    %c0_i32 = arith.constant 0 : i32
    %c0_i32_0 = arith.constant 0 : i32
    %c0_i32_1 = arith.constant 0 : i32
    return %c0_i32, %c0_i32_0 : i32, i32
  }
  func.func @transform_5(%arg0: i32) -> (i32, i32, i32) {
    %c0_i32 = arith.constant 0 : i32
    %c0_i32_0 = arith.constant 0 : i32
    %c0_i32_1 = arith.constant 0 : i32
    return %arg0, %c0_i32, %c0_i32_0 : i32, i32, i32
  }
}

</mosaic_0001>

<llo_original>
// kernel: neural_net_forward.1
$region0: #{neural_net_forward.1}
  #allocation0 [shape = 'u32[]', space=smem, size = 0x4, offset = 0x4, fixed_abs, tag = 'smem constant byte address 0x4 - core index']
  #allocation1 [shape = 'u32[144,128]{1,0:T(1,128)}', space=vmem, size = 0x12000, scoped, tag = 'internal scratch']
  %s0 = inlined_call_operand.hbm [shape: f32[8,32], index: 0, kind: input, shape index: {}]
  %s1 = inlined_call_operand.hbm [shape: bf16[32,128], index: 1, kind: input, shape index: {}]
  %s2 = inlined_call_operand.hbm [shape: bf16[2,128,128], index: 2, kind: input, shape index: {}]
  %s3 = inlined_call_operand.vmem [shape: f32[8,128], index: 3, kind: input, shape index: {}]
  %s4 = inlined_call_operand.hbm [shape: f32[4,128], index: 4, kind: input, shape index: {}]
  %s5 = inlined_call_operand.hbm [shape: f32[1,1,8], index: 5, kind: output, shape index: {}]
  %s6 = sld [smem:[#allocation0]]
  $region46: #{neural_net_forward.1} parent=0
    _
  %s8 = ssub.s32 1, %s6
  %s9 = scalar_select 0, %s8, %s6
  $region1: #{neural_net_forward.1} parent=0
    #allocation2 [shape = 'u8[4096]{0}', space=vmem, size = 0x1000, scoped, tag = 'input window, operand 0, single buffered']
    #allocation3 [shape = 's32[1]{0}', space=sflag, size = 0x4, scoped, tag = 'scoped memory for neural_net_forward.1']
    #allocation4 [shape = 's32[1]{0}', space=sflag, size = 0x4, scoped, tag = 'scoped memory for neural_net_forward.1']
    #allocation5 [shape = 'u8[8192]{0}', space=vmem, size = 0x2000, scoped, tag = 'input window, operand 1, single buffered']
    #allocation6 [shape = 's32[1]{0}', space=sflag, size = 0x4, scoped, tag = 'scoped memory for neural_net_forward.1']
    #allocation7 [shape = 'u8[65536]{0}', space=vmem, size = 0x10000, scoped, tag = 'input window, operand 2, single buffered']
    #allocation8 [shape = 'u8[2048]{0}', space=vmem, size = 0x800, scoped, tag = 'input window, operand 4, single buffered']
    #allocation9 [shape = 's32[1]{0}', space=sflag, size = 0x4, scoped, tag = 'scoped memory for neural_net_forward.1']
    #allocation10 [shape = 'u8[512]{0}', space=vmem, size = 0x400, scoped, tag = 'output window, operand 0, single buffered']
    %10 = vsyncpa [#allocation3], 0
    %11 = vsyncpa [#allocation6], 0
    %12 = vsyncpa [#allocation9], 0
    %13 = vsyncpa [#allocation4], 0
    // Predicated region
    $region2: #{neural_net_forward.1} parent=1 // pred_check
      _
    $region3: #{neural_net_forward.1} parent=1 // pred_check_branch
      %15 = sbr.rel (0) target = $region5
    $region4: #{neural_net_forward.1} parent=1 // pred_region
      %s17 = ssub.s32 128, 128
      %18 = vsyncadd [#allocation3], %s17
      %s20 = sshll.u32 [#allocation2], 4
      %s21 = int_to_ptr.vmem [resolvable:$true] %s20
      %23 = dma.hbm_to_vmem [thread:$0]  %s0, 128, %s21, [#allocation3]
    $region5: #{neural_net_forward.1} parent=1 // pred_fallthru
      _
    // Predicated region
    $region6: #{neural_net_forward.1} parent=1 // pred_check
      _
    $region7: #{neural_net_forward.1} parent=1 // pred_check_branch
      %25 = sbr.rel (0) target = $region9
    $region8: #{neural_net_forward.1} parent=1 // pred_region
      %s27 = ssub.s32 256, 256
      %28 = vsyncadd [#allocation6], %s27
      %s29 = sshll.u32 [#allocation5], 4
      %s30 = int_to_ptr.vmem [resolvable:$true] %s29
      %35 = dma.hbm_to_vmem [thread:$0]  %s1, 256, %s30, [#allocation6], 64, 64, 4
    $region9: #{neural_net_forward.1} parent=1 // pred_fallthru
      _
    // Predicated region
    $region10: #{neural_net_forward.1} parent=1 // pred_check
      _
    $region11: #{neural_net_forward.1} parent=1 // pred_check_branch
      %37 = sbr.rel (0) target = $region13
    $region12: #{neural_net_forward.1} parent=1 // pred_region
      %s39 = ssub.s32 2048, 2048
      %40 = vsyncadd [#allocation6], %s39
      %s41 = sshll.u32 [#allocation7], 4
      %s42 = int_to_ptr.vmem [resolvable:$true] %s41
      %47 = dma.hbm_to_vmem [thread:$0]  %s2, 2048, %s42, [#allocation6], 64, 64, 4
    $region13: #{neural_net_forward.1} parent=1 // pred_fallthru
      _
    // Predicated region
    $region14: #{neural_net_forward.1} parent=1 // pred_check
      _
    $region15: #{neural_net_forward.1} parent=1 // pred_check_branch
      %49 = sbr.rel (0) target = $region17
    $region16: #{neural_net_forward.1} parent=1 // pred_region
      _
    $region17: #{neural_net_forward.1} parent=1 // pred_fallthru
      _
    // Predicated region
    $region18: #{neural_net_forward.1} parent=1 // pred_check
      _
    $region19: #{neural_net_forward.1} parent=1 // pred_check_branch
      %51 = sbr.rel (0) target = $region21
    $region20: #{neural_net_forward.1} parent=1 // pred_region
      %s53 = ssub.s32 64, 64
      %54 = vsyncadd [#allocation9], %s53
      %s56 = sshll.u32 [#allocation8], 4
      %s57 = int_to_ptr.vmem [resolvable:$true] %s56
      %59 = dma.hbm_to_vmem [thread:$0]  %s4, 64, %s57, [#allocation9]
    $region21: #{neural_net_forward.1} parent=1 // pred_fallthru
      _
    // Predicated region
    $region22: #{neural_net_forward.1} parent=1 // pred_check
      _
    $region23: #{neural_net_forward.1} parent=1 // pred_check_branch
      %61 = sbr.rel (0) target = $region25
    $region24: #{neural_net_forward.1} parent=1 // pred_region
      %62 = dma.done [#allocation3], 128
    $region25: #{neural_net_forward.1} parent=1 // pred_fallthru
      _
    // Predicated region
    $region26: #{neural_net_forward.1} parent=1 // pred_check
      _
    $region27: #{neural_net_forward.1} parent=1 // pred_check_branch
      %64 = sbr.rel (0) target = $region29
    $region28: #{neural_net_forward.1} parent=1 // pred_region
      %65 = dma.done [#allocation6], 256
    $region29: #{neural_net_forward.1} parent=1 // pred_fallthru
      _
    // Predicated region
    $region30: #{neural_net_forward.1} parent=1 // pred_check
      _
    $region31: #{neural_net_forward.1} parent=1 // pred_check_branch
      %67 = sbr.rel (0) target = $region33
    $region32: #{neural_net_forward.1} parent=1 // pred_region
      %68 = dma.done [#allocation6], 2048
    $region33: #{neural_net_forward.1} parent=1 // pred_fallthru
      _
    // Predicated region
    $region34: #{neural_net_forward.1} parent=1 // pred_check
      _
    $region35: #{neural_net_forward.1} parent=1 // pred_check_branch
      %70 = sbr.rel (0) target = $region37
    $region36: #{neural_net_forward.1} parent=1 // pred_region
      %71 = dma.done [#allocation9], 64
    $region37: #{neural_net_forward.1} parent=1 // pred_fallthru
      _
    %v73 = vld [vmem:[#allocation8] sm:$0xf]
    %v74 = vld [vmem:[#allocation2] sm:$0xff]
    %v75 = vpack.c.bf16 %v74, %v74
    %v76 = vld [vmem:[#allocation5] sm:$0xf]
    %v77 = vld [vmem:[#allocation5 + $0x4] sm:$0xf]
    %v78 = vld [vmem:[#allocation5 + $0x8] sm:$0xf]
    %v79 = vld [vmem:[#allocation5 + $0xc] sm:$0xf]
    %v80 = vlaneseq
    %v81 = vshrl.u32 %v80, 7
    %v82 = vsub.s32 0, %v81
    %v83 = vrot.slane %v73, %v82
    %v88 = vunpack.c.l.b16 %v76
    %v89 = vunpack.c.l.b16 %v77
    %v90 = vunpack.c.l.b16 %v78
    %v91 = vunpack.c.l.b16 %v79
    %v92 = vpack.c.b16 %v89, %v88
    %v93 = vpack.c.b16 %v91, %v90
    %vm96 = vcmask 261120
    %v98 = vsel %vm96, %v75, 0
    %100 = vmatprep.subr.bf16.mxu0 0
    %101 = vmatpush1.bf16.msra.mxu0 %v92
    %102 = vmatprep.subr.bf16.mxu0 0
    %103 = vmatpush1.bf16.msra.mxu0 %v93
    %104 = vmatprep.subr.bf16.mxu0 0
    %105 = vmatpush1.bf16.msra.mxu0 0
    %106 = vmatprep.subr.bf16.mxu0 0
    %107 = vmatpush1.bf16.msra.mxu0 0
    %108 = vmatprep.subr.bf16.mxu0 0
    %109 = vmatpush1.bf16.msra.mxu0 0
    %110 = vmatprep.subr.bf16.mxu0 0
    %111 = vmatpush1.bf16.msra.mxu0 0
    %112 = vmatprep.subr.bf16.mxu0 0
    %113 = vmatpush1.bf16.msra.mxu0 0
    %114 = vmatprep.subr.bf16.mxu0 0
    %115 = vmatpush1.bf16.msra.mxu0 0
    %116 = vmatprep.subr.bf16.mxu0 0
    %117 = vmatpush1.bf16.msra.mxu0 0
    %118 = vmatprep.subr.bf16.mxu0 0
    %119 = vmatpush1.bf16.msra.mxu0 0
    %120 = vmatprep.subr.bf16.mxu0 0
    %121 = vmatpush1.bf16.msra.mxu0 0
    %122 = vmatprep.subr.bf16.mxu0 0
    %123 = vmatpush1.bf16.msra.mxu0 0
    %124 = vmatprep.subr.bf16.mxu0 0
    %125 = vmatpush1.bf16.msra.mxu0 0
    %126 = vmatprep.subr.bf16.mxu0 0
    %127 = vmatpush1.bf16.msra.mxu0 0
    %128 = vmatprep.subr.bf16.mxu0 0
    %129 = vmatpush1.bf16.msra.mxu0 0
    %130 = vmatprep.subr.bf16.mxu0 0
    %131 = vmatpush1.bf16.msra.mxu0 0
    %132 = vmatprep.mubr.bf16.mxu0 0
    %133 = vmatmul.mubr.bf16.gmra.mrb[0].mxu0 %v98
    %v134 = vpop.f32.mrb[0].mxu0
    %v135 = vadd.f32 %v83, %v134
    %v136 = vpop.f32.mrb[0].mxu0
    %v137 = vpop.f32.mrb[0].mxu0
    %v138 = vpop.f32.mrb[0].mxu0
    %139 = vdwg.mxu0
    %v140 = vmax.f32 %v135, 0.0
    %v141 = vpack.c.bf16 %v140, %v140
    %v142 = vld [vmem:[#allocation7] sm:$0xf]
    %v143 = vld [vmem:[#allocation7 + $0x4] sm:$0xf]
    %v144 = vld [vmem:[#allocation7 + $0x8] sm:$0xf]
    %v145 = vld [vmem:[#allocation7 + $0xc] sm:$0xf]
    %v146 = vld [vmem:[#allocation7 + $0x10] sm:$0xf]
    %v147 = vld [vmem:[#allocation7 + $0x14] sm:$0xf]
    %v148 = vld [vmem:[#allocation7 + $0x18] sm:$0xf]
    %v149 = vld [vmem:[#allocation7 + $0x1c] sm:$0xf]
    %v150 = vld [vmem:[#allocation7 + $0x20] sm:$0xf]
    %v151 = vld [vmem:[#allocation7 + $0x24] sm:$0xf]
    %v152 = vld [vmem:[#allocation7 + $0x28] sm:$0xf]
    %v153 = vld [vmem:[#allocation7 + $0x2c] sm:$0xf]
    %v154 = vld [vmem:[#allocation7 + $0x30] sm:$0xf]
    %v155 = vld [vmem:[#allocation7 + $0x34] sm:$0xf]
    %v156 = vld [vmem:[#allocation7 + $0x38] sm:$0xf]
    %v157 = vld [vmem:[#allocation7 + $0x3c] sm:$0xf]
    %v158 = vlaneseq
    %v159 = vshrl.u32 %v158, 7
    %v160 = vsub.s32 1, %v159
    %v161 = vrot.slane %v73, %v160
    %v178 = vunpack.c.l.b16 %v142
    %v179 = vunpack.c.l.b16 %v143
    %v180 = vunpack.c.l.b16 %v144
    %v181 = vunpack.c.l.b16 %v145
    %v182 = vunpack.c.l.b16 %v146
    %v183 = vunpack.c.l.b16 %v147
    %v184 = vunpack.c.l.b16 %v148
    %v185 = vunpack.c.l.b16 %v149
    %v186 = vunpack.c.l.b16 %v150
    %v187 = vunpack.c.l.b16 %v151
    %v188 = vunpack.c.l.b16 %v152
    %v189 = vunpack.c.l.b16 %v153
    %v190 = vunpack.c.l.b16 %v154
    %v191 = vunpack.c.l.b16 %v155
    %v192 = vunpack.c.l.b16 %v156
    %v193 = vunpack.c.l.b16 %v157
    %v194 = vpack.c.b16 %v179, %v178
    %v195 = vpack.c.b16 %v181, %v180
    %v196 = vpack.c.b16 %v183, %v182
    %v197 = vpack.c.b16 %v185, %v184
    %v198 = vpack.c.b16 %v187, %v186
    %v199 = vpack.c.b16 %v189, %v188
    %v200 = vpack.c.b16 %v191, %v190
    %v201 = vpack.c.b16 %v193, %v192
    %210 = vmatprep.subr.bf16.mxu0 0
    %211 = vmatpush1.bf16.msra.mxu0 %v194
    %212 = vmatprep.subr.bf16.mxu0 0
    %213 = vmatpush1.bf16.msra.mxu0 %v195
    %214 = vmatprep.subr.bf16.mxu0 0
    %215 = vmatpush1.bf16.msra.mxu0 %v196
    %216 = vmatprep.subr.bf16.mxu0 0
    %217 = vmatpush1.bf16.msra.mxu0 %v197
    %218 = vmatprep.subr.bf16.mxu0 0
    %219 = vmatpush1.bf16.msra.mxu0 %v198
    %220 = vmatprep.subr.bf16.mxu0 0
    %221 = vmatpush1.bf16.msra.mxu0 %v199
    %222 = vmatprep.subr.bf16.mxu0 0
    %223 = vmatpush1.bf16.msra.mxu0 %v200
    %224 = vmatprep.subr.bf16.mxu0 0
    %225 = vmatpush1.bf16.msra.mxu0 %v201
    %226 = vmatprep.subr.bf16.mxu0 0
    %227 = vmatpush1.bf16.msra.mxu0 0
    %228 = vmatprep.subr.bf16.mxu0 0
    %229 = vmatpush1.bf16.msra.mxu0 0
    %230 = vmatprep.subr.bf16.mxu0 0
    %231 = vmatpush1.bf16.msra.mxu0 0
    %232 = vmatprep.subr.bf16.mxu0 0
    %233 = vmatpush1.bf16.msra.mxu0 0
    %234 = vmatprep.subr.bf16.mxu0 0
    %235 = vmatpush1.bf16.msra.mxu0 0
    %236 = vmatprep.subr.bf16.mxu0 0
    %237 = vmatpush1.bf16.msra.mxu0 0
    %238 = vmatprep.subr.bf16.mxu0 0
    %239 = vmatpush1.bf16.msra.mxu0 0
    %240 = vmatprep.subr.bf16.mxu0 0
    %241 = vmatpush1.bf16.msra.mxu0 0
    %242 = vmatprep.mubr.bf16.mxu0 0
    %243 = vmatmul.mubr.bf16.gmra.mrb[0].mxu0 %v141
    %v244 = vpop.f32.mrb[0].mxu0
    %v245 = vadd.f32 %v161, %v244
    %v246 = vpop.f32.mrb[0].mxu0
    %v247 = vpop.f32.mrb[0].mxu0
    %v248 = vpop.f32.mrb[0].mxu0
    %249 = vdwg.mxu0
    %v250 = vmax.f32 %v245, 0.0
    %v251 = vpack.c.bf16 %v250, %v250
    %s252 = scalar_lea.vmem [#allocation7], 64
    %v253 = vld [vmem:[%s252] sm:$0xf]
    %v254 = vld [vmem:[%s252 + $0x4] sm:$0xf]
    %v255 = vld [vmem:[%s252 + $0x8] sm:$0xf]
    %v256 = vld [vmem:[%s252 + $0xc] sm:$0xf]
    %v257 = vld [vmem:[%s252 + $0x10] sm:$0xf]
    %v258 = vld [vmem:[%s252 + $0x14] sm:$0xf]
    %v259 = vld [vmem:[%s252 + $0x18] sm:$0xf]
    %v260 = vld [vmem:[%s252 + $0x1c] sm:$0xf]
    %v261 = vld [vmem:[%s252 + $0x20] sm:$0xf]
    %v262 = vld [vmem:[%s252 + $0x24] sm:$0xf]
    %v263 = vld [vmem:[%s252 + $0x28] sm:$0xf]
    %v264 = vld [vmem:[%s252 + $0x2c] sm:$0xf]
    %v265 = vld [vmem:[%s252 + $0x30] sm:$0xf]
    %v266 = vld [vmem:[%s252 + $0x34] sm:$0xf]
    %v267 = vld [vmem:[%s252 + $0x38] sm:$0xf]
    %v268 = vld [vmem:[%s252 + $0x3c] sm:$0xf]
    %v269 = vlaneseq
    %v270 = vshrl.u32 %v269, 7
    %v271 = vsub.s32 2, %v270
    %v272 = vrot.slane %v73, %v271
    %v289 = vunpack.c.l.b16 %v253
    %v290 = vunpack.c.l.b16 %v254
    %v291 = vunpack.c.l.b16 %v255
    %v292 = vunpack.c.l.b16 %v256
    %v293 = vunpack.c.l.b16 %v257
    %v294 = vunpack.c.l.b16 %v258
    %v295 = vunpack.c.l.b16 %v259
    %v296 = vunpack.c.l.b16 %v260
    %v297 = vunpack.c.l.b16 %v261
    %v298 = vunpack.c.l.b16 %v262
    %v299 = vunpack.c.l.b16 %v263
    %v300 = vunpack.c.l.b16 %v264
    %v301 = vunpack.c.l.b16 %v265
    %v302 = vunpack.c.l.b16 %v266
    %v303 = vunpack.c.l.b16 %v267
    %v304 = vunpack.c.l.b16 %v268
    %v305 = vpack.c.b16 %v290, %v289
    %v306 = vpack.c.b16 %v292, %v291
    %v307 = vpack.c.b16 %v294, %v293
    %v308 = vpack.c.b16 %v296, %v295
    %v309 = vpack.c.b16 %v298, %v297
    %v310 = vpack.c.b16 %v300, %v299
    %v311 = vpack.c.b16 %v302, %v301
    %v312 = vpack.c.b16 %v304, %v303
    %321 = vmatprep.subr.bf16.mxu0 0
    %322 = vmatpush1.bf16.msra.mxu0 %v305
    %323 = vmatprep.subr.bf16.mxu0 0
    %324 = vmatpush1.bf16.msra.mxu0 %v306
    %325 = vmatprep.subr.bf16.mxu0 0
    %326 = vmatpush1.bf16.msra.mxu0 %v307
    %327 = vmatprep.subr.bf16.mxu0 0
    %328 = vmatpush1.bf16.msra.mxu0 %v308
    %329 = vmatprep.subr.bf16.mxu0 0
    %330 = vmatpush1.bf16.msra.mxu0 %v309
    %331 = vmatprep.subr.bf16.mxu0 0
    %332 = vmatpush1.bf16.msra.mxu0 %v310
    %333 = vmatprep.subr.bf16.mxu0 0
    %334 = vmatpush1.bf16.msra.mxu0 %v311
    %335 = vmatprep.subr.bf16.mxu0 0
    %336 = vmatpush1.bf16.msra.mxu0 %v312
    %337 = vmatprep.subr.bf16.mxu0 0
    %338 = vmatpush1.bf16.msra.mxu0 0
    %339 = vmatprep.subr.bf16.mxu0 0
    %340 = vmatpush1.bf16.msra.mxu0 0
    %341 = vmatprep.subr.bf16.mxu0 0
    %342 = vmatpush1.bf16.msra.mxu0 0
    %343 = vmatprep.subr.bf16.mxu0 0
    %344 = vmatpush1.bf16.msra.mxu0 0
    %345 = vmatprep.subr.bf16.mxu0 0
    %346 = vmatpush1.bf16.msra.mxu0 0
    %347 = vmatprep.subr.bf16.mxu0 0
    %348 = vmatpush1.bf16.msra.mxu0 0
    %349 = vmatprep.subr.bf16.mxu0 0
    %350 = vmatpush1.bf16.msra.mxu0 0
    %351 = vmatprep.subr.bf16.mxu0 0
    %352 = vmatpush1.bf16.msra.mxu0 0
    %353 = vmatprep.mubr.bf16.mxu0 0
    %354 = vmatmul.mubr.bf16.gmra.mrb[0].mxu0 %v251
    %v355 = vpop.f32.mrb[0].mxu0
    %v356 = vadd.f32 %v272, %v355
    %v357 = vpop.f32.mrb[0].mxu0
    %v358 = vpop.f32.mrb[0].mxu0
    %v359 = vpop.f32.mrb[0].mxu0
    %360 = vdwg.mxu0
    %v361 = vmax.f32 %v356, 0.0
    %v362 = vld [vmem:[%s3] sm:$0xff]
    %363 = vmatprep.subr.mxu0 0.0
    %364 = vmatpush1.xpose.msra.mxu0 %v361
    %365 = vmatprep.subr.mxu0 0.0
    %366 = vmatpush1.xpose.msra.mxu0 0.0
    %367 = vmatprep.subr.mxu0 0.0
    %368 = vmatpush1.xpose.msra.mxu0 0.0
    %369 = vmatprep.subr.mxu0 0.0
    %370 = vmatpush1.xpose.msra.mxu0 0.0
    %371 = vmatprep.subr.mxu0 0.0
    %372 = vmatpush1.xpose.msra.mxu0 0.0
    %373 = vmatprep.subr.mxu0 0.0
    %374 = vmatpush1.xpose.msra.mxu0 0.0
    %375 = vmatprep.subr.mxu0 0.0
    %376 = vmatpush1.xpose.msra.mxu0 0.0
    %377 = vmatprep.subr.mxu0 0.0
    %378 = vmatpush1.xpose.msra.mxu0 0.0
    %379 = vmatprep.subr.mxu0 0.0
    %380 = vmatpush1.xpose.msra.mxu0 0.0
    %381 = vmatprep.subr.mxu0 0.0
    %382 = vmatpush1.xpose.msra.mxu0 0.0
    %383 = vmatprep.subr.mxu0 0.0
    %384 = vmatpush1.xpose.msra.mxu0 0.0
    %385 = vmatprep.subr.mxu0 0.0
    %386 = vmatpush1.xpose.msra.mxu0 0.0
    %387 = vmatprep.subr.mxu0 0.0
    %388 = vmatpush1.xpose.msra.mxu0 0.0
    %389 = vmatprep.subr.mxu0 0.0
    %390 = vmatpush1.xpose.msra.mxu0 0.0
    %391 = vmatprep.subr.mxu0 0.0
    %392 = vmatpush1.xpose.msra.mxu0 0.0
    %393 = vmatprep.subr.mxu0 0.0
    %394 = vmatpush1.xpose.msra.mxu0 0.0
    %395 = vmatprep.subr.mxu0 0.0
    %396 = vmatpush1.xpose.msra.mxu0 0.0
    %397 = vmatprep.subr.mxu0 0.0
    %398 = vmatpush1.xpose.msra.mxu0 0.0
    %399 = vmatprep.subr.mxu0 0.0
    %400 = vmatpush1.xpose.msra.mxu0 0.0
    %401 = vmatprep.subr.mxu0 0.0
    %402 = vmatpush1.xpose.msra.mxu0 0.0
    %403 = vmatprep.subr.mxu0 0.0
    %404 = vmatpush1.xpose.msra.mxu0 0.0
    %405 = vmatprep.subr.mxu0 0.0
    %406 = vmatpush1.xpose.msra.mxu0 0.0
    %407 = vmatprep.subr.mxu0 0.0
    %408 = vmatpush1.xpose.msra.mxu0 0.0
    %409 = vmatprep.subr.mxu0 0.0
    %410 = vmatpush1.xpose.msra.mxu0 0.0
    %411 = vmatprep.subr.mxu0 0.0
    %412 = vmatpush1.xpose.msra.mxu0 0.0
    %413 = vmatprep.subr.mxu0 0.0
    %414 = vmatpush1.xpose.msra.mxu0 0.0
    %415 = vmatprep.subr.mxu0 0.0
    %416 = vmatpush1.xpose.msra.mxu0 0.0
    %417 = vmatprep.subr.mxu0 0.0
    %418 = vmatpush1.xpose.msra.mxu0 0.0
    %419 = vmatprep.subr.mxu0 0.0
    %420 = vmatpush1.xpose.msra.mxu0 0.0
    %421 = vmatprep.subr.mxu0 0.0
    %422 = vmatpush1.xpose.msra.mxu0 0.0
    %423 = vmatprep.subr.mxu0 0.0
    %424 = vmatpush1.xpose.msra.mxu0 0.0
    %425 = vmatprep.subr.mxu0 0.0
    %426 = vmatpush1.xpose.msra.mxu0 0.0
    %427 = vmatprep.mubr.f32.mxu0 0.0
    %428 = vmatmul.mubr.f32.gmra.mrb[0].mxu0 %v362
    %v429 = vpop.f32.mrb[0].mxu0
    %v430 = vadd.f32 0.0, %v429
    %v431 = vpop.f32.mrb[0].mxu0
    %432 = vdwg.mxu0
    %434 = vset.pattern.permute.xlu0 0
    %435 = vperm.xlu0 %434, %v73
    %v436 = vpop.permute.xlu0 %435
    %v437 = vrot.slane %v436, 3
    %v439 = vadd.f32 %v430, %v437
    %vm440 = vcmask 57344
    %441 = vst.msk [vmem:[#allocation10] sm:$0x1] %vm440, %v439
    // Predicated region
    $region38: #{neural_net_forward.1} parent=1 // pred_check
      _
    $region39: #{neural_net_forward.1} parent=1 // pred_check_branch
      %443 = sbr.rel (0) target = $region41
    $region40: #{neural_net_forward.1} parent=1 // pred_region
      %s445 = ssub.s32 16, 16
      %446 = vsyncadd [#allocation4], %s445
      %s448 = sshll.u32 [#allocation10], 4
      %s449 = int_to_ptr.vmem [resolvable:$true] %s448
      %451 = dma.vmem_to_hbm [thread:$0]  %s449, 16, %s5, [#allocation4]
    $region41: #{neural_net_forward.1} parent=1 // pred_fallthru
      _
    // Predicated region
    $region42: #{neural_net_forward.1} parent=1 // pred_check
      _
    $region43: #{neural_net_forward.1} parent=1 // pred_check_branch
      %453 = sbr.rel (0) target = $region45
    $region44: #{neural_net_forward.1} parent=1 // pred_region
      %454 = dma.done [#allocation4], 16
    $region45: #{neural_net_forward.1} parent=1 // pred_fallthru
      _
    %455 = vsyncpa [#allocation3], 1
    %456 = vsyncpa [#allocation6], 1
    %457 = vsyncpa [#allocation9], 1
    %458 = vsyncpa [#allocation4], 1

</llo_original>
